<compile_context>
chip_gen: v7x
topology: tpu7x:2x2x1
jax: 0.10.0
libtpu: 0.0.40
codegen_flags: <defaults>
</compile_context>

<pallas_src>
from functools import partial

import jax
import jax.numpy as jnp
from jax.experimental import pallas as pl
from jax.experimental.pallas import tpu as pltpu

_LANES = 128                            # vreg lane width
_SUBLANES = 8                           # vreg sublane depth
_VMEM_LIMIT_BYTES = 32 * 1024 * 1024    # modest cap; actual footprint is a few MiB
_VMEM_BUDGET_BYTES = 12 * 1024 * 1024   # budget used to size the batch tile


def _round_up(x, m):
    return (x + m - 1) // m * m


def _default_tb(B, D_in, H_pad, C, x_bytes, out_bytes, comp_bytes):
    """Pick a batch-tile size from a VMEM budget, clamped to [256, 4096]."""
    # Resident (double-buffered) weights/biases come out of the budget first.
    weight_bytes = 2 * ((D_in * H_pad + H_pad * C) * comp_bytes + (H_pad + C) * 4)
    budget = max(_VMEM_BUDGET_BYTES - weight_bytes, 1 << 20)
    # Streamed per-row bytes: double-buffered x tile + output tile, plus the
    # in-kernel f32 / compute-dtype hidden intermediates.
    per_row = 2 * (D_in * x_bytes + C * out_bytes) + H_pad * (4 + comp_bytes)
    tb = budget // max(per_row, 1)
    tb = max(256, min((tb // 256) * 256, 4096))
    # v7x has 2 TensorCores: once the batch is big enough to split, keep the
    # grid at >= 2 steps so the "parallel" axis can feed both cores.
    if B >= 512:
        tb = min(tb, _round_up((B + 1) // 2, _SUBLANES))
    if tb >= B:
        return B                                  # single full-batch block
    return max(_SUBLANES, (tb // _SUBLANES) * _SUBLANES)


def adapter_mlp_kernel(x_ref, w1_ref, b1_ref, w2_ref, b2_ref, o_ref):
    # x_ref:  (tb, D_in)  input dtype       w1_ref: (D_in, H_pad) compute dtype
    # b1_ref: (1, H_pad)  f32               w2_ref: (H_pad, C)    compute dtype
    # b2_ref: (1, C)      f32               o_ref:  (tb, C)       out dtype
    x = x_ref[...].astype(w1_ref.dtype)           # cast in-kernel (VPU), no HBM pass
    h = jnp.dot(x, w1_ref[...], preferred_element_type=jnp.float32)
    h = jnp.maximum(h + b1_ref[...], 0.0)         # bias + ReLU in f32 (VPU)
    h = h.astype(w2_ref.dtype)                    # back to MXU operand dtype
    out = jnp.dot(h, w2_ref[...], preferred_element_type=jnp.float32)
    out = out + b2_ref[...]
    o_ref[...] = out.astype(o_ref.dtype)          # narrow (tb, C) store


def prepare_adapter_params(w1, b1, w2, b2, compute_dtype=jnp.bfloat16):
    """Pad H to a multiple of 128 (lane-dense hidden) and cast weights.

    w1: [D_in, H], b1: [H], w2: [H, C], b2: [C]  (weights stored [in, out],
    i.e. pre-transposed relative to nn.Linear).  Zero-padding of the hidden
    dim is mathematically neutral (relu(0 + 0) = 0 feeds zero rows of w2).
    Call this ONCE at parameter-prep time, not per forward call.
    """
    D_in, H = w1.shape
    C = w2.shape[1]
    H_pad = _round_up(H, _LANES)
    w1_p = jnp.zeros((D_in, H_pad), compute_dtype).at[:, :H].set(
        w1.astype(compute_dtype))
    b1_p = jnp.zeros((1, H_pad), jnp.float32).at[0, :H].set(
        b1.astype(jnp.float32))
    w2_p = jnp.zeros((H_pad, C), compute_dtype).at[:H, :].set(
        w2.astype(compute_dtype))
    b2_p = jnp.asarray(b2, jnp.float32).reshape(1, C)
    return w1_p, b1_p, w2_p, b2_p


@partial(jax.jit, static_argnames=("tb", "out_dtype"))
def adapter_mlp_apply(x, w1_p, b1_p, w2_p, b2_p, *, tb=None, out_dtype=None):
    """x: [B, D_in] -> [B, C], using params from prepare_adapter_params."""
    B, D_in = x.shape
    H_pad = w1_p.shape[1]
    C = w2_p.shape[1]
    out_dtype = x.dtype if out_dtype is None else out_dtype

    if tb is None:
        tb = _default_tb(B, D_in, H_pad, C,
                         jnp.dtype(x.dtype).itemsize,
                         jnp.dtype(out_dtype).itemsize,
                         jnp.dtype(w1_p.dtype).itemsize)
    tb = min(tb, B)
    if tb < B:
        tb = max(_SUBLANES, (tb // _SUBLANES) * _SUBLANES)

    grid = (pl.cdiv(B, tb),)   # ragged last block: OOB reads clipped, writes masked

    return pl.pallas_call(
        adapter_mlp_kernel,
        out_shape=jax.ShapeDtypeStruct((B, C), out_dtype),
        grid_spec=pltpu.PrefetchScalarGridSpec(
            num_scalar_prefetch=0,
            grid=grid,
            in_specs=[
                pl.BlockSpec((tb, D_in), lambda i: (i, 0)),      # x:  streamed
                pl.BlockSpec((D_in, H_pad), lambda i: (0, 0)),   # w1: resident
                pl.BlockSpec((1, H_pad), lambda i: (0, 0)),      # b1: resident
                pl.BlockSpec((H_pad, C), lambda i: (0, 0)),      # w2: resident
                pl.BlockSpec((1, C), lambda i: (0, 0)),          # b2: resident
            ],
            # Narrow (B, C) output: ~8x fewer HBM write bytes than a 128-lane
            # padded output; the masked store is cheap next to the saved bytes.
            out_specs=pl.BlockSpec((tb, C), lambda i: (i, 0)),
        ),
        compiler_params=pltpu.CompilerParams(
            dimension_semantics=("parallel",),      # multi-step grid feeds both v7x TCs
            vmem_limit_bytes=_VMEM_LIMIT_BYTES,
        ),
    )(x, w1_p, b1_p, w2_p, b2_p)


def adapter_mlp(x, w1, b1, w2, b2, *, compute_dtype=jnp.bfloat16, tb=None,
                out_dtype=None):
    """One-shot convenience wrapper (prep + apply).

    In real use hoist prepare_adapter_params() out of the per-step path.
    """
    params = prepare_adapter_params(w1, b1, w2, b2, compute_dtype)
    return adapter_mlp_apply(x, *params, tb=tb, out_dtype=out_dtype)


def reference_mlp(x, w1, b1, w2, b2):
    h = jnp.maximum(x @ w1 + b1, 0.0)
    return h @ w2 + b2


if __name__ == "__main__":
    # Small shapes consistent with AdapterMLP(num_classes, input_size, hidden_size)
    batch = 8
    input_size = 32
    hidden_size = 64
    num_classes = 16

    key = jax.random.PRNGKey(0)
    kx, kw1, kb1, kw2, kb2, kx2 = jax.random.split(key, 6)

    x = jax.random.normal(kx, (batch, input_size), dtype=jnp.float32)

    # Deterministic init mimicking nn.Linear's uniform(-1/sqrt(fan_in), 1/sqrt(fan_in)).
    bound1 = 1.0 / (input_size ** 0.5)
    w1 = jax.random.uniform(kw1, (input_size, hidden_size), jnp.float32,
                            minval=-bound1, maxval=bound1)
    b1 = jax.random.uniform(kb1, (hidden_size,), jnp.float32,
                            minval=-bound1, maxval=bound1)
    bound2 = 1.0 / (hidden_size ** 0.5)
    w2 = jax.random.uniform(kw2, (hidden_size, num_classes), jnp.float32,
                            minval=-bound2, maxval=bound2)
    b2 = jax.random.uniform(kb2, (num_classes,), jnp.float32,
                            minval=-bound2, maxval=bound2)

    ref = reference_mlp(x, w1, b1, w2, b2)

    # Parameter prep hoisted out of the per-call path (done once).
    params_f32 = prepare_adapter_params(w1, b1, w2, b2, compute_dtype=jnp.float32)
    params_bf16 = prepare_adapter_params(w1, b1, w2, b2)   # default bf16 operands

    # 1) f32 compute path: module semantics. Loose-ish tolerance covers possible
    #    differences in default f32 matmul emulation between XLA and Mosaic;
    #    pass precision=HIGHEST in both if bit-tight f32 is required.
    out_f32 = jax.block_until_ready(adapter_mlp_apply(x, *params_f32))
    assert out_f32.shape == (batch, num_classes)
    assert jnp.allclose(out_f32, ref, atol=1e-2, rtol=1e-2)

    # 2) Default bf16-operand / f32-accumulate path (the fast path).
    out_bf16 = jax.block_until_ready(adapter_mlp_apply(x, *params_bf16))
    assert out_bf16.shape == (batch, num_classes)
    assert jnp.allclose(out_bf16, ref, atol=5e-2, rtol=5e-2)

    # 3) Ragged larger batch: exercises the cdiv grid with a partial last block
    #    (OOB reads clipped / writes masked) and the multi-step parallel grid.
    big_batch = 1037
    xb = jax.random.normal(kx2, (big_batch, input_size), dtype=jnp.float32)
    out_big = jax.block_until_ready(adapter_mlp_apply(xb, *params_bf16, tb=256))
    ref_big = reference_mlp(xb, w1, b1, w2, b2)
    assert out_big.shape == (big_batch, num_classes)
    assert jnp.allclose(out_big, ref_big, atol=5e-2, rtol=5e-2)

    print("KERNEL_OK")
</pallas_src>

<mosaic_0001>
module attributes {stable_mosaic.version = 11 : i64} {
  func.func @adapter_mlp_kernel(%arg0: i32, %arg1: memref<8x32xf32, #tpu.memory_space<vmem>>, %arg2: memref<32x128xf32, #tpu.memory_space<vmem>>, %arg3: memref<1x128xf32, #tpu.memory_space<vmem>>, %arg4: memref<128x16xf32, #tpu.memory_space<vmem>>, %arg5: memref<1x16xf32, #tpu.memory_space<vmem>>, %arg6: memref<8x16xf32, #tpu.memory_space<vmem>>) attributes {dimension_semantics = [#tpu.dimension_semantics<parallel>], iteration_bounds = array<i64: 1>, scalar_prefetch = 0 : i64, scratch_operands = 0 : i64, tpu.core_type = #tpu.core_type<tc>, window_params = [{transform_indices = @transform_0, window_bounds = array<i64: 8, 32>}, {pipeline_mode = #tpu.pipeline_mode<synchronous>, transform_indices = @transform_1, window_bounds = array<i64: 32, 128>}, {pipeline_mode = #tpu.pipeline_mode<synchronous>, transform_indices = @transform_2, window_bounds = array<i64: 1, 128>}, {pipeline_mode = #tpu.pipeline_mode<synchronous>, transform_indices = @transform_3, window_bounds = array<i64: 128, 16>}, {pipeline_mode = #tpu.pipeline_mode<synchronous>, transform_indices = @transform_4, window_bounds = array<i64: 1, 16>}, {transform_indices = @transform_5, window_bounds = array<i64: 8, 16>}]} {
    %c0 = arith.constant 0 : index
    %c0_0 = arith.constant 0 : index
    %0 = vector.load %arg1[%c0, %c0_0] : memref<8x32xf32, #tpu.memory_space<vmem>>, vector<8x32xf32>
    %c0_1 = arith.constant 0 : index
    %c0_2 = arith.constant 0 : index
    %1 = vector.load %arg2[%c0_1, %c0_2] : memref<32x128xf32, #tpu.memory_space<vmem>>, vector<32x128xf32>
    %cst = arith.constant dense<0.000000e+00> : vector<8x128xf32>
    %2 = tpu.matmul %0, %1, %cst {dimension_numbers = #tpu.dot_dimension_numbers<[1], [0], [0], [1], [0, 0, 1, 1], [], []>} : vector<8x32xf32>, vector<32x128xf32>, vector<8x128xf32> -> vector<8x128xf32>
    %c0_3 = arith.constant 0 : index
    %c0_4 = arith.constant 0 : index
    %3 = vector.load %arg3[%c0_3, %c0_4] : memref<1x128xf32, #tpu.memory_space<vmem>>, vector<1x128xf32>
    %4 = vector.broadcast %3 : vector<1x128xf32> to vector<8x128xf32>
    %5 = arith.addf %2, %4 : vector<8x128xf32>
    %cst_5 = arith.constant 0.000000e+00 : f32
    %6 = vector.broadcast %cst_5 : f32 to vector<8x128xf32>
    %7 = arith.maximumf %5, %6 : vector<8x128xf32>
    %c0_6 = arith.constant 0 : index
    %c0_7 = arith.constant 0 : index
    %8 = vector.load %arg4[%c0_6, %c0_7] : memref<128x16xf32, #tpu.memory_space<vmem>>, vector<128x16xf32>
    %cst_8 = arith.constant dense<0.000000e+00> : vector<8x16xf32>
    %9 = tpu.matmul %7, %8, %cst_8 {dimension_numbers = #tpu.dot_dimension_numbers<[1], [0], [0], [1], [0, 0, 1, 1], [], []>} : vector<8x128xf32>, vector<128x16xf32>, vector<8x16xf32> -> vector<8x16xf32>
    %c0_9 = arith.constant 0 : index
    %c0_10 = arith.constant 0 : index
    %10 = vector.load %arg5[%c0_9, %c0_10] : memref<1x16xf32, #tpu.memory_space<vmem>>, vector<1x16xf32>
    %11 = vector.broadcast %10 : vector<1x16xf32> to vector<8x16xf32>
    %12 = arith.addf %9, %11 : vector<8x16xf32>
    %c0_11 = arith.constant 0 : index
    %c0_12 = arith.constant 0 : index
    %13 = vector.load %arg6[%c0_11, %c0_12] : memref<8x16xf32, #tpu.memory_space<vmem>>, vector<8x16xf32>
    tpu.vector_store %arg6[%c0_11, %c0_12], %12 {strides = array<i32>} : memref<8x16xf32, #tpu.memory_space<vmem>>, vector<8x16xf32>,
    return
  }
  func.func @transform_0(%arg0: i32) -> (i32, i32) {
    %c0_i32 = arith.constant 0 : i32
    %c0_i32_0 = arith.constant 0 : i32
    return %arg0, %c0_i32 : i32, i32
  }
  func.func @transform_1(%arg0: i32) -> (i32, i32) {
    %c0_i32 = arith.constant 0 : i32
    %c0_i32_0 = arith.constant 0 : i32
    %c0_i32_1 = arith.constant 0 : i32
    return %c0_i32, %c0_i32_0 : i32, i32
  }
  func.func @transform_2(%arg0: i32) -> (i32, i32) {
    %c0_i32 = arith.constant 0 : i32
    %c0_i32_0 = arith.constant 0 : i32
    %c0_i32_1 = arith.constant 0 : i32
    return %c0_i32, %c0_i32_0 : i32, i32
  }
  func.func @transform_3(%arg0: i32) -> (i32, i32) {
    %c0_i32 = arith.constant 0 : i32
    %c0_i32_0 = arith.constant 0 : i32
    %c0_i32_1 = arith.constant 0 : i32
    return %c0_i32, %c0_i32_0 : i32, i32
  }
  func.func @transform_4(%arg0: i32) -> (i32, i32) {
    %c0_i32 = arith.constant 0 : i32
    %c0_i32_0 = arith.constant 0 : i32
    %c0_i32_1 = arith.constant 0 : i32
    return %c0_i32, %c0_i32_0 : i32, i32
  }
  func.func @transform_5(%arg0: i32) -> (i32, i32) {
    %c0_i32 = arith.constant 0 : i32
    %c0_i32_0 = arith.constant 0 : i32
    return %arg0, %c0_i32 : i32, i32
  }
}

</mosaic_0001>

<llo_original>
// kernel: adapter_mlp_apply.1
$region0: #{adapter_mlp_apply.1}
  #allocation0 [shape = 'u32[]', space=smem, size = 0x4, offset = 0x4, fixed_abs, tag = 'smem constant byte address 0x4 - core index']
  #allocation1 [shape = 'u32[144,128]{1,0:T(1,128)}', space=vmem, size = 0x12000, scoped, tag = 'internal scratch']
  %s0 = inlined_call_operand.vmem [shape: f32[8,32], index: 0, kind: input, shape index: {}]
  %s1 = inlined_call_operand.vmem [shape: f32[32,128], index: 1, kind: input, shape index: {}]
  %s2 = inlined_call_operand.vmem [shape: f32[1,128], index: 2, kind: input, shape index: {}]
  %s3 = inlined_call_operand.vmem [shape: f32[128,16], index: 3, kind: input, shape index: {}]
  %s4 = inlined_call_operand.vmem [shape: f32[1,16], index: 4, kind: input, shape index: {}]
  %s5 = inlined_call_operand.hbm [shape: f32[8,16], index: 5, kind: output, shape index: {}]
  %s6 = sld [smem:[#allocation0]]
  $region30: #{adapter_mlp_apply.1} parent=0
    _
  %s8 = ssub.s32 1, %s6
  %s9 = scalar_select 0, %s8, %s6
  $region1: #{adapter_mlp_apply.1} parent=0
    #allocation2 [shape = 'u8[4096]{0}', space=vmem, size = 0x1000, scoped, tag = 'output window, operand 0, single buffered']
    #allocation3 [shape = 's32[1]{0}', space=sflag, size = 0x4, scoped, tag = 'scoped memory for adapter_mlp_apply.1']
    %10 = vsyncpa [#allocation3], 0
    // Predicated region
    $region2: #{adapter_mlp_apply.1} parent=1 // pred_check
      _
    $region3: #{adapter_mlp_apply.1} parent=1 // pred_check_branch
      %12 = sbr.rel (0) target = $region5
    $region4: #{adapter_mlp_apply.1} parent=1 // pred_region
      _
    $region5: #{adapter_mlp_apply.1} parent=1 // pred_fallthru
      _
    // Predicated region
    $region6: #{adapter_mlp_apply.1} parent=1 // pred_check
      _
    $region7: #{adapter_mlp_apply.1} parent=1 // pred_check_branch
      %14 = sbr.rel (0) target = $region9
    $region8: #{adapter_mlp_apply.1} parent=1 // pred_region
      _
    $region9: #{adapter_mlp_apply.1} parent=1 // pred_fallthru
      _
    // Predicated region
    $region10: #{adapter_mlp_apply.1} parent=1 // pred_check
      _
    $region11: #{adapter_mlp_apply.1} parent=1 // pred_check_branch
      %16 = sbr.rel (0) target = $region13
    $region12: #{adapter_mlp_apply.1} parent=1 // pred_region
      _
    $region13: #{adapter_mlp_apply.1} parent=1 // pred_fallthru
      _
    // Predicated region
    $region14: #{adapter_mlp_apply.1} parent=1 // pred_check
      _
    $region15: #{adapter_mlp_apply.1} parent=1 // pred_check_branch
      %18 = sbr.rel (0) target = $region17
    $region16: #{adapter_mlp_apply.1} parent=1 // pred_region
      _
    $region17: #{adapter_mlp_apply.1} parent=1 // pred_fallthru
      _
    // Predicated region
    $region18: #{adapter_mlp_apply.1} parent=1 // pred_check
      _
    $region19: #{adapter_mlp_apply.1} parent=1 // pred_check_branch
      %20 = sbr.rel (0) target = $region21
    $region20: #{adapter_mlp_apply.1} parent=1 // pred_region
      _
    $region21: #{adapter_mlp_apply.1} parent=1 // pred_fallthru
      _
    %v21 = vld [vmem:[%s0] sm:$0xff]
    %v22 = vld [vmem:[%s1] sm:$0xff]
    %v23 = vld [vmem:[%s1 + $0x8] sm:$0xff]
    %v24 = vld [vmem:[%s1 + $0x10] sm:$0xff]
    %v25 = vld [vmem:[%s1 + $0x18] sm:$0xff]
    %v26 = vld [vmem:[%s2] sm:$0x1]
    %v28 = vlaneseq
    %v29 = vshrl.u32 %v28, 7
    %v30 = vsub.s32 0, %v29
    %v31 = vrot.slane %v26, %v30
    %vm33 = vcmask 261120
    %v35 = vsel %vm33, %v21, 0
    %37 = vmatprep.subr.mxu0 0.0
    %38 = vmatpush1.msra.mxu0 %v22
    %39 = vmatprep.subr.mxu0 0.0
    %40 = vmatpush1.msra.mxu0 %v23
    %41 = vmatprep.subr.mxu0 0.0
    %42 = vmatpush1.msra.mxu0 %v24
    %43 = vmatprep.subr.mxu0 0.0
    %44 = vmatpush1.msra.mxu0 %v25
    %45 = vmatprep.subr.mxu0 0.0
    %46 = vmatpush1.msra.mxu0 0.0
    %47 = vmatprep.subr.mxu0 0.0
    %48 = vmatpush1.msra.mxu0 0.0
    %49 = vmatprep.subr.mxu0 0.0
    %50 = vmatpush1.msra.mxu0 0.0
    %51 = vmatprep.subr.mxu0 0.0
    %52 = vmatpush1.msra.mxu0 0.0
    %53 = vmatprep.subr.mxu0 0.0
    %54 = vmatpush1.msra.mxu0 0.0
    %55 = vmatprep.subr.mxu0 0.0
    %56 = vmatpush1.msra.mxu0 0.0
    %57 = vmatprep.subr.mxu0 0.0
    %58 = vmatpush1.msra.mxu0 0.0
    %59 = vmatprep.subr.mxu0 0.0
    %60 = vmatpush1.msra.mxu0 0.0
    %61 = vmatprep.subr.mxu0 0.0
    %62 = vmatpush1.msra.mxu0 0.0
    %63 = vmatprep.subr.mxu0 0.0
    %64 = vmatpush1.msra.mxu0 0.0
    %65 = vmatprep.subr.mxu0 0.0
    %66 = vmatpush1.msra.mxu0 0.0
    %67 = vmatprep.subr.mxu0 0.0
    %68 = vmatpush1.msra.mxu0 0.0
    %69 = vmatprep.subr.mxu0 0.0
    %70 = vmatpush1.msra.mxu0 0.0
    %71 = vmatprep.subr.mxu0 0.0
    %72 = vmatpush1.msra.mxu0 0.0
    %73 = vmatprep.subr.mxu0 0.0
    %74 = vmatpush1.msra.mxu0 0.0
    %75 = vmatprep.subr.mxu0 0.0
    %76 = vmatpush1.msra.mxu0 0.0
    %77 = vmatprep.subr.mxu0 0.0
    %78 = vmatpush1.msra.mxu0 0.0
    %79 = vmatprep.subr.mxu0 0.0
    %80 = vmatpush1.msra.mxu0 0.0
    %81 = vmatprep.subr.mxu0 0.0
    %82 = vmatpush1.msra.mxu0 0.0
    %83 = vmatprep.subr.mxu0 0.0
    %84 = vmatpush1.msra.mxu0 0.0
    %85 = vmatprep.subr.mxu0 0.0
    %86 = vmatpush1.msra.mxu0 0.0
    %87 = vmatprep.subr.mxu0 0.0
    %88 = vmatpush1.msra.mxu0 0.0
    %89 = vmatprep.subr.mxu0 0.0
    %90 = vmatpush1.msra.mxu0 0.0
    %91 = vmatprep.subr.mxu0 0.0
    %92 = vmatpush1.msra.mxu0 0.0
    %93 = vmatprep.subr.mxu0 0.0
    %94 = vmatpush1.msra.mxu0 0.0
    %95 = vmatprep.subr.mxu0 0.0
    %96 = vmatpush1.msra.mxu0 0.0
    %97 = vmatprep.subr.mxu0 0.0
    %98 = vmatpush1.msra.mxu0 0.0
    %99 = vmatprep.subr.mxu0 0.0
    %100 = vmatpush1.msra.mxu0 0.0
    %101 = vmatprep.mubr.f32.mxu0 0.0
    %102 = vmatmul.mubr.f32.gmra.mrb[0].mxu0 %v35
    %v103 = vpop.f32.mrb[0].mxu0
    %v104 = vadd.f32 %v31, %v103
    %v105 = vpop.f32.mrb[0].mxu0
    %106 = vdwg.mxu0
    %v107 = vmax.f32 %v104, 0.0
    %v108 = vld [vmem:[%s3] sm:$0xff]
    %v109 = vld [vmem:[%s3 + $0x8] sm:$0xff]
    %v110 = vld [vmem:[%s3 + $0x10] sm:$0xff]
    %v111 = vld [vmem:[%s3 + $0x18] sm:$0xff]
    %v112 = vld [vmem:[%s3 + $0x20] sm:$0xff]
    %v113 = vld [vmem:[%s3 + $0x28] sm:$0xff]
    %v114 = vld [vmem:[%s3 + $0x30] sm:$0xff]
    %v115 = vld [vmem:[%s3 + $0x38] sm:$0xff]
    %v116 = vld [vmem:[%s3 + $0x40] sm:$0xff]
    %v117 = vld [vmem:[%s3 + $0x48] sm:$0xff]
    %v118 = vld [vmem:[%s3 + $0x50] sm:$0xff]
    %v119 = vld [vmem:[%s3 + $0x58] sm:$0xff]
    %v120 = vld [vmem:[%s3 + $0x60] sm:$0xff]
    %v121 = vld [vmem:[%s3 + $0x68] sm:$0xff]
    %v122 = vld [vmem:[%s3 + $0x70] sm:$0xff]
    %v123 = vld [vmem:[%s3 + $0x78] sm:$0xff]
    %v124 = vld [vmem:[%s4] sm:$0x1]
    %v126 = vlaneseq
    %v127 = vshrl.u32 %v126, 7
    %v128 = vsub.s32 0, %v127
    %v129 = vrot.slane %v124, %v128
    %131 = vmatprep.subr.mxu0 0.0
    %132 = vmatpush1.msra.mxu0 %v108
    %133 = vmatprep.subr.mxu0 0.0
    %134 = vmatpush1.msra.mxu0 %v109
    %135 = vmatprep.subr.mxu0 0.0
    %136 = vmatpush1.msra.mxu0 %v110
    %137 = vmatprep.subr.mxu0 0.0
    %138 = vmatpush1.msra.mxu0 %v111
    %139 = vmatprep.subr.mxu0 0.0
    %140 = vmatpush1.msra.mxu0 %v112
    %141 = vmatprep.subr.mxu0 0.0
    %142 = vmatpush1.msra.mxu0 %v113
    %143 = vmatprep.subr.mxu0 0.0
    %144 = vmatpush1.msra.mxu0 %v114
    %145 = vmatprep.subr.mxu0 0.0
    %146 = vmatpush1.msra.mxu0 %v115
    %147 = vmatprep.subr.mxu0 0.0
    %148 = vmatpush1.msra.mxu0 %v116
    %149 = vmatprep.subr.mxu0 0.0
    %150 = vmatpush1.msra.mxu0 %v117
    %151 = vmatprep.subr.mxu0 0.0
    %152 = vmatpush1.msra.mxu0 %v118
    %153 = vmatprep.subr.mxu0 0.0
    %154 = vmatpush1.msra.mxu0 %v119
    %155 = vmatprep.subr.mxu0 0.0
    %156 = vmatpush1.msra.mxu0 %v120
    %157 = vmatprep.subr.mxu0 0.0
    %158 = vmatpush1.msra.mxu0 %v121
    %159 = vmatprep.subr.mxu0 0.0
    %160 = vmatpush1.msra.mxu0 %v122
    %161 = vmatprep.subr.mxu0 0.0
    %162 = vmatpush1.msra.mxu0 %v123
    %163 = vmatprep.subr.mxu0 0.0
    %164 = vmatpush1.msra.mxu0 0.0
    %165 = vmatprep.subr.mxu0 0.0
    %166 = vmatpush1.msra.mxu0 0.0
    %167 = vmatprep.subr.mxu0 0.0
    %168 = vmatpush1.msra.mxu0 0.0
    %169 = vmatprep.subr.mxu0 0.0
    %170 = vmatpush1.msra.mxu0 0.0
    %171 = vmatprep.subr.mxu0 0.0
    %172 = vmatpush1.msra.mxu0 0.0
    %173 = vmatprep.subr.mxu0 0.0
    %174 = vmatpush1.msra.mxu0 0.0
    %175 = vmatprep.subr.mxu0 0.0
    %176 = vmatpush1.msra.mxu0 0.0
    %177 = vmatprep.subr.mxu0 0.0
    %178 = vmatpush1.msra.mxu0 0.0
    %179 = vmatprep.subr.mxu0 0.0
    %180 = vmatpush1.msra.mxu0 0.0
    %181 = vmatprep.subr.mxu0 0.0
    %182 = vmatpush1.msra.mxu0 0.0
    %183 = vmatprep.subr.mxu0 0.0
    %184 = vmatpush1.msra.mxu0 0.0
    %185 = vmatprep.subr.mxu0 0.0
    %186 = vmatpush1.msra.mxu0 0.0
    %187 = vmatprep.subr.mxu0 0.0
    %188 = vmatpush1.msra.mxu0 0.0
    %189 = vmatprep.subr.mxu0 0.0
    %190 = vmatpush1.msra.mxu0 0.0
    %191 = vmatprep.subr.mxu0 0.0
    %192 = vmatpush1.msra.mxu0 0.0
    %193 = vmatprep.subr.mxu0 0.0
    %194 = vmatpush1.msra.mxu0 0.0
    %195 = vmatprep.mubr.f32.mxu0 0.0
    %196 = vmatmul.mubr.f32.gmra.mrb[0].mxu0 %v107
    %v197 = vpop.f32.mrb[0].mxu0
    %v198 = vadd.f32 %v129, %v197
    %v199 = vpop.f32.mrb[0].mxu0
    %200 = vdwg.mxu0
    %vm201 = vcmask 130048
    %202 = vst.msk [vmem:[#allocation2] sm:$0xff] %vm201, %v198
    // Predicated region
    $region22: #{adapter_mlp_apply.1} parent=1 // pred_check
      _
    $region23: #{adapter_mlp_apply.1} parent=1 // pred_check_branch
      %204 = sbr.rel (0) target = $region25
    $region24: #{adapter_mlp_apply.1} parent=1 // pred_region
      %s206 = ssub.s32 128, 128
      %207 = vsyncadd [#allocation3], %s206
      %s209 = sshll.u32 [#allocation2], 4
      %s210 = int_to_ptr.vmem [resolvable:$true] %s209
      %212 = dma.vmem_to_hbm [thread:$0]  %s210, 128, %s5, [#allocation3]
    $region25: #{adapter_mlp_apply.1} parent=1 // pred_fallthru
      _
    // Predicated region
    $region26: #{adapter_mlp_apply.1} parent=1 // pred_check
      _
    $region27: #{adapter_mlp_apply.1} parent=1 // pred_check_branch
      %214 = sbr.rel (0) target = $region29
    $region28: #{adapter_mlp_apply.1} parent=1 // pred_region
      %215 = dma.done [#allocation3], 128
    $region29: #{adapter_mlp_apply.1} parent=1 // pred_fallthru
      _
    %216 = vsyncpa [#allocation3], 1

</llo_original>
